<compile_context>
chip_gen: v5e
topology: v5e:2x2
jax: 0.10.0
libtpu: 0.0.40
codegen_flags: <defaults>
</compile_context>

<pallas_src>
import jax
import jax.numpy as jnp
from jax.experimental import pallas as pl
from jax.experimental.pallas import tpu as pltpu


# --------------------------------------------------------------------------
# Glue: closed-form Krylov construction (vectorized, no sequential scan).
# --------------------------------------------------------------------------
def krylov_matrices(subdiag, V):
    """Return (r, n, n) with K_i[j, k] = (Z^k V_i)[j], Z[j+1, j] = subdiag[j].

    Closed form:  K_i[j, k] = (j >= k) * V_i[j - k] * prod_{t=1..k} subdiag[j-t]
    The band products are one vectorized cumprod over an (n, n) matrix.
    """
    n = V.shape[-1]
    j = jnp.arange(n)[:, None]          # (n, 1)
    k = jnp.arange(n)[None, :]          # (1, n)
    lower = j >= k                      # (n, n)
    # band_terms[j, t] = subdiag[j - t] for 1 <= t <= j, else 1 (empty product)
    gather = jnp.clip(j - k, 0, n - 2)
    band_terms = jnp.where((k >= 1) & (k <= j),
                           subdiag[gather],
                           jnp.ones((), subdiag.dtype))
    band = jnp.cumprod(band_terms.astype(jnp.float32), axis=1)      # (n, n)
    v_shift = V[:, jnp.where(lower, j - k, 0)]                      # (r, n, n)
    return jnp.where(lower[None], v_shift * band[None], 0.0)


# --------------------------------------------------------------------------
# Pallas kernel: out = (x @ KB_cat) @ KA_cat^T + bias, tiled.
# Grid = (batch tiles, output-column tiles, contraction (r*n) tiles).
# --------------------------------------------------------------------------
def ldr_kernel(x_ref, kb_ref, ka_ref, b_ref, o_ref, acc_ref):
    li = pl.program_id(2)

    @pl.when(li == 0)
    def _():
        acc_ref[...] = jnp.zeros_like(acc_ref)

    # Stage 1: (bm, n) @ (n, bl) -> (bm, bl), f32 accumulation on the MXU.
    tmp = jnp.dot(x_ref[...], kb_ref[...], preferred_element_type=jnp.float32)

    # Stage 2: contract the bl axis of tmp with the bl axis of the KA tile
    # (trans_b dot_general -> no materialized XLU transpose).
    acc_ref[...] += jax.lax.dot_general(
        tmp.astype(ka_ref.dtype), ka_ref[...],
        dimension_numbers=(((1,), (1,)), ((), ())),
        preferred_element_type=jnp.float32)

    @pl.when(li == pl.num_programs(2) - 1)
    def _():
        o_ref[...] = (acc_ref[...] + b_ref[...].astype(jnp.float32)
                      ).astype(o_ref.dtype)


def _pick_tile(dim, candidates):
    for c in candidates:
        if dim % c == 0:
            return c
    return dim  # fall back to the full (untiled) dimension


def ldr_subdiagonal_forward(x, subd_A, subd_B, G, H, bias=None, *,
                            compute_dtype=jnp.bfloat16):
    batch, n = x.shape
    r = G.shape[0]
    L = r * n

    # Parameter preprocessing (glue).
    k_A = krylov_matrices(subd_A, G)                                  # (r, n, n)
    k_B = krylov_matrices(subd_B, H)                                  # (r, n, n)
    # Fold the rank axis into one long contraction dim: KA_cat[:, i*n + k] = K_A_i[:, k]
    ka_cat = jnp.transpose(k_A, (1, 0, 2)).reshape(n, L).astype(compute_dtype)
    kb_cat = jnp.transpose(k_B, (1, 0, 2)).reshape(n, L).astype(compute_dtype)
    x_c = x.astype(compute_dtype)
    if bias is None:
        bias = jnp.zeros((n,), jnp.float32)
    bias2d = bias.reshape(1, n).astype(jnp.float32)

    # Tile sizes: lane-dense (multiples of 128) where the shape allows,
    # otherwise the full (small) dimension.
    bm = _pick_tile(batch, (256, 128, 64, 32, 16, 8))
    bn = _pick_tile(n, (512, 256, 128))
    bl = _pick_tile(L, (512, 256, 128))
    grid = (batch // bm, n // bn, L // bl)

    # Explicit VMEM budget: double-buffered pipeline blocks + f32 accumulator.
    cbytes = jnp.dtype(compute_dtype).itemsize
    obytes = jnp.dtype(x.dtype).itemsize
    block_bytes = ((bm * n + n * bl + bn * bl) * cbytes
                   + bn * 4 + bm * bn * obytes)
    est = 2 * block_bytes + bm * bn * 4
    vmem_limit = int(min(128 * 1024 * 1024, max(32 * 1024 * 1024, 2 * est)))

    grid_spec = pltpu.PrefetchScalarGridSpec(
        num_scalar_prefetch=0,
        grid=grid,
        in_specs=[
            pl.BlockSpec((bm, n), lambda b, j, l: (b, 0)),    # x: batch tile, full n
            pl.BlockSpec((n, bl), lambda b, j, l: (0, l)),    # KB_cat: contraction slice
            pl.BlockSpec((bn, bl), lambda b, j, l: (j, l)),   # KA_cat: out rows x contraction
            pl.BlockSpec((1, bn), lambda b, j, l: (0, j)),    # bias
        ],
        out_specs=pl.BlockSpec((bm, bn), lambda b, j, l: (b, j)),
        scratch_shapes=[pltpu.VMEM((bm, bn), jnp.float32)],   # output accumulator
    )

    return pl.pallas_call(
        ldr_kernel,
        out_shape=jax.ShapeDtypeStruct((batch, n), x.dtype),
        grid_spec=grid_spec,
        compiler_params=pltpu.CompilerParams(
            dimension_semantics=("parallel", "parallel", "arbitrary"),
            vmem_limit_bytes=vmem_limit),
    )(x_c, kb_cat, ka_cat, bias2d)


if __name__ == "__main__":
    # Small shapes consistent with the module's forward (2-D activations).
    layer_size = 32   # n (hidden)
    batch = 8
    r = 3             # displacement rank

    key = jax.random.PRNGKey(0)
    kg, kh, kx, ksa, ksb = jax.random.split(key, 5)

    # Deterministic parameter init mirroring the PyTorch __init__ (subdiagonals
    # perturbed away from 1 to exercise the closed-form Krylov construction).
    init_std = (1.0 / (r * layer_size)) ** 0.5
    G = init_std * jax.random.normal(kg, (r, layer_size), dtype=jnp.float32)
    H = init_std * jax.random.normal(kh, (r, layer_size), dtype=jnp.float32)
    subd_A = 1.0 + 0.1 * jax.random.normal(ksa, (layer_size - 1,), dtype=jnp.float32)
    subd_B = 1.0 + 0.1 * jax.random.normal(ksb, (layer_size - 1,), dtype=jnp.float32)
    bias = 0.01 * jnp.arange(layer_size, dtype=jnp.float32)

    x = jax.random.normal(kx, (batch, layer_size), dtype=jnp.float32)

    # Pure-JAX reference (scan-based Krylov construction, f32 throughout).
    def krylov_scan(subdiag, v):
        def step(c, _):
            c_next = jnp.concatenate([jnp.zeros((1,), c.dtype), subdiag * c[:-1]])
            return c_next, c
        _, cols = jax.lax.scan(step, v, None, length=v.shape[0])
        return cols.T

    k_A_ref = jax.vmap(lambda g: krylov_scan(subd_A, g))(G)
    k_B_ref = jax.vmap(lambda h: krylov_scan(subd_B, h))(H)
    M = jnp.einsum("rjk,rlk->jl", k_A_ref, k_B_ref)
    ref = x @ M.T + bias

    # f32 compute path: validates the kernel structure tightly.
    out_f32 = jax.block_until_ready(
        ldr_subdiagonal_forward(x, subd_A, subd_B, G, H, bias,
                                compute_dtype=jnp.float32))
    assert jnp.allclose(out_f32, ref, atol=1e-4, rtol=1e-4), "f32 mismatch vs reference"

    # bf16 compute path (performance configuration, f32 MXU accumulation).
    out_bf16 = jax.block_until_ready(
        ldr_subdiagonal_forward(x, subd_A, subd_B, G, H, bias,
                                compute_dtype=jnp.bfloat16))
    assert jnp.allclose(out_bf16, ref, atol=3e-2, rtol=3e-2), "bf16 mismatch vs reference"

    print("KERNEL_OK")
</pallas_src>

<mosaic_0001>
module attributes {stable_mosaic.version = 11 : i64} {
  func.func @ldr_kernel(%arg0: i32, %arg1: i32, %arg2: i32, %arg3: memref<8x32xf32, #tpu.memory_space<vmem>>, %arg4: memref<32x96xf32, #tpu.memory_space<vmem>>, %arg5: memref<32x96xf32, #tpu.memory_space<vmem>>, %arg6: memref<1x32xf32, #tpu.memory_space<vmem>>, %arg7: memref<8x32xf32, #tpu.memory_space<vmem>>, %arg8: memref<8x32xf32, #tpu.memory_space<vmem>>) attributes {dimension_semantics = [#tpu.dimension_semantics<parallel>, #tpu.dimension_semantics<parallel>, #tpu.dimension_semantics<arbitrary>], iteration_bounds = array<i64: 1, 1, 1>, scalar_prefetch = 0 : i64, scratch_operands = 1 : i64, tpu.core_type = #tpu.core_type<tc>, window_params = [{transform_indices = @transform_0, window_bounds = array<i64: 8, 32>}, {transform_indices = @transform_1, window_bounds = array<i64: 32, 96>}, {transform_indices = @transform_2, window_bounds = array<i64: 32, 96>}, {transform_indices = @transform_3, window_bounds = array<i64: 1, 32>}, {transform_indices = @transform_4, window_bounds = array<i64: 8, 32>}]} {
    %c0_i32 = arith.constant 0 : i32
    %0 = arith.cmpi eq, %arg2, %c0_i32 : i32
    %1 = arith.extui %0 : i1 to i32
    %c0_i32_0 = arith.constant 0 : i32
    %2 = arith.cmpi ne, %1, %c0_i32_0 : i32
    scf.if %2 {
      %cst_13 = arith.constant 0.000000e+00 : f32
      %14 = vector.broadcast %cst_13 : f32 to vector<8x32xf32>
      %c0_14 = arith.constant 0 : index
      %c0_15 = arith.constant 0 : index
      %15 = vector.load %arg8[%c0_14, %c0_15] : memref<8x32xf32, #tpu.memory_space<vmem>>, vector<8x32xf32>
      tpu.vector_store %arg8[%c0_14, %c0_15], %14 {strides = array<i32>} : memref<8x32xf32, #tpu.memory_space<vmem>>, vector<8x32xf32>,
    } else {
    }
    %c0 = arith.constant 0 : index
    %c0_1 = arith.constant 0 : index
    %3 = vector.load %arg3[%c0, %c0_1] : memref<8x32xf32, #tpu.memory_space<vmem>>, vector<8x32xf32>
    %c0_2 = arith.constant 0 : index
    %c0_3 = arith.constant 0 : index
    %4 = vector.load %arg4[%c0_2, %c0_3] : memref<32x96xf32, #tpu.memory_space<vmem>>, vector<32x96xf32>
    %cst = arith.constant dense<0.000000e+00> : vector<8x96xf32>
    %5 = tpu.matmul %3, %4, %cst {dimension_numbers = #tpu.dot_dimension_numbers<[1], [0], [0], [1], [0, 0, 1, 1], [], []>} : vector<8x32xf32>, vector<32x96xf32>, vector<8x96xf32> -> vector<8x96xf32>
    %c0_4 = arith.constant 0 : index
    %c0_5 = arith.constant 0 : index
    %6 = vector.load %arg8[%c0_4, %c0_5] : memref<8x32xf32, #tpu.memory_space<vmem>>, vector<8x32xf32>
    %c0_6 = arith.constant 0 : index
    %c0_7 = arith.constant 0 : index
    %7 = vector.load %arg5[%c0_6, %c0_7] : memref<32x96xf32, #tpu.memory_space<vmem>>, vector<32x96xf32>
    %cst_8 = arith.constant dense<0.000000e+00> : vector<8x32xf32>
    %8 = tpu.matmul %5, %7, %cst_8 {dimension_numbers = #tpu.dot_dimension_numbers<[1], [1], [0], [0], [0, 0, 1, 0], [], []>} : vector<8x96xf32>, vector<32x96xf32>, vector<8x32xf32> -> vector<8x32xf32>
    %9 = arith.addf %6, %8 : vector<8x32xf32>
    %c0_9 = arith.constant 0 : index
    %c0_10 = arith.constant 0 : index
    %10 = vector.load %arg8[%c0_9, %c0_10] : memref<8x32xf32, #tpu.memory_space<vmem>>, vector<8x32xf32>
    tpu.vector_store %arg8[%c0_9, %c0_10], %9 {strides = array<i32>} : memref<8x32xf32, #tpu.memory_space<vmem>>, vector<8x32xf32>,
    %c0_i32_11 = arith.constant 0 : i32
    %11 = arith.cmpi eq, %arg2, %c0_i32_11 : i32
    %12 = arith.extui %11 : i1 to i32
    %c0_i32_12 = arith.constant 0 : i32
    %13 = arith.cmpi ne, %12, %c0_i32_12 : i32
    scf.if %13 {
      %c0_13 = arith.constant 0 : index
      %c0_14 = arith.constant 0 : index
      %14 = vector.load %arg8[%c0_13, %c0_14] : memref<8x32xf32, #tpu.memory_space<vmem>>, vector<8x32xf32>
      %c0_15 = arith.constant 0 : index
      %c0_16 = arith.constant 0 : index
      %15 = vector.load %arg6[%c0_15, %c0_16] : memref<1x32xf32, #tpu.memory_space<vmem>>, vector<1x32xf32>
      %16 = vector.broadcast %15 : vector<1x32xf32> to vector<8x32xf32>
      %17 = arith.addf %14, %16 : vector<8x32xf32>
      %c0_17 = arith.constant 0 : index
      %c0_18 = arith.constant 0 : index
      %18 = vector.load %arg7[%c0_17, %c0_18] : memref<8x32xf32, #tpu.memory_space<vmem>>, vector<8x32xf32>
      tpu.vector_store %arg7[%c0_17, %c0_18], %17 {strides = array<i32>} : memref<8x32xf32, #tpu.memory_space<vmem>>, vector<8x32xf32>,
    } else {
    }
    return
  }
  func.func @transform_0(%arg0: i32, %arg1: i32, %arg2: i32) -> (i32, i32) {
    %c0_i32 = arith.constant 0 : i32
    %c0_i32_0 = arith.constant 0 : i32
    return %arg0, %c0_i32 : i32, i32
  }
  func.func @transform_1(%arg0: i32, %arg1: i32, %arg2: i32) -> (i32, i32) {
    %c0_i32 = arith.constant 0 : i32
    %c0_i32_0 = arith.constant 0 : i32
    return %c0_i32, %arg2 : i32, i32
  }
  func.func @transform_2(%arg0: i32, %arg1: i32, %arg2: i32) -> (i32, i32) {
    %c0_i32 = arith.constant 0 : i32
    return %arg1, %arg2 : i32, i32
  }
  func.func @transform_3(%arg0: i32, %arg1: i32, %arg2: i32) -> (i32, i32) {
    %c0_i32 = arith.constant 0 : i32
    %c0_i32_0 = arith.constant 0 : i32
    return %c0_i32, %arg1 : i32, i32
  }
  func.func @transform_4(%arg0: i32, %arg1: i32, %arg2: i32) -> (i32, i32) {
    %c0_i32 = arith.constant 0 : i32
    return %arg0, %arg1 : i32, i32
  }
}

</mosaic_0001>

<llo_original>
// kernel: tpu_custom_call.1
$region0: #{tpu_custom_call.1}
  #allocation0 [shape = 'u32[]', space=smem, size = 0x4, offset = 0x4, fixed_abs, tag = 'smem constant byte address 0x4 - core index']
  #allocation1 [shape = 'u32[72,128]{1,0:T(1,128)}', space=vmem, size = 0x9000, scoped, tag = 'internal scratch']
  #allocation2 [shape = 'f32[8,32]{1,0:T(8,128)}', space=vmem, size = 0x1000, scoped, tag = 'scratch operand']
  %s0 = inlined_call_operand.hbm [shape: f32[8,32], index: 0, kind: input, shape index: {}]
  %s1 = inlined_call_operand.hbm [shape: f32[32,96], index: 1, kind: input, shape index: {}]
  %s2 = inlined_call_operand.hbm [shape: f32[32,96], index: 2, kind: input, shape index: {}]
  %s3 = inlined_call_operand.vmem [shape: f32[1,32], index: 3, kind: input, shape index: {}]
  %s4 = inlined_call_operand.hbm [shape: f32[8,32], index: 4, kind: output, shape index: {}]
  %s5 = sld [smem:[#allocation0]]
  $region46: #{tpu_custom_call.1} parent=0
    _
  %s7 = ssub.s32 1, %s5
  %s8 = scalar_select 0, %s7, %s5
  $region1: #{tpu_custom_call.1} parent=0
    #allocation3 [shape = 'u8[4096]{0}', space=vmem, size = 0x1000, scoped, tag = 'input window, operand 0, single buffered']
    #allocation4 [shape = 's32[1]{0}', space=sflag, size = 0x4, scoped, tag = 'scoped memory for tpu_custom_call.1']
    #allocation5 [shape = 's32[1]{0}', space=sflag, size = 0x4, scoped, tag = 'scoped memory for tpu_custom_call.1']
    #allocation6 [shape = 'u8[16384]{0}', space=vmem, size = 0x4000, scoped, tag = 'input window, operand 1, single buffered']
    #allocation7 [shape = 's32[1]{0}', space=sflag, size = 0x4, scoped, tag = 'scoped memory for tpu_custom_call.1']
    #allocation8 [shape = 'u8[16384]{0}', space=vmem, size = 0x4000, scoped, tag = 'input window, operand 2, single buffered']
    #allocation9 [shape = 'u8[4096]{0}', space=vmem, size = 0x1000, scoped, tag = 'output window, operand 0, single buffered']
    %9 = vsyncpa [#allocation4], 0
    %10 = vsyncpa [#allocation7], 0
    %11 = vsyncpa [#allocation5], 0
    // Predicated region
    $region2: #{tpu_custom_call.1} parent=1 // pred_check
      _
    $region3: #{tpu_custom_call.1} parent=1 // pred_check_branch
      %13 = sbr.rel (0) target = $region5
    $region4: #{tpu_custom_call.1} parent=1 // pred_region
      %15 = vsyncadd [#allocation4], 0
      %s17 = sshll.u32 %s0, 4
      %s18 = int_to_ptr.hbm [resolvable:$true] %s17
      %s19 = sshll.u32 [#allocation3], 4
      %s20 = int_to_ptr.vmem [resolvable:$true] %s19
      %22 = dma.hbm_to_vmem [thread:$0]  %s18, 128, %s20, [#allocation4]
    $region5: #{tpu_custom_call.1} parent=1 // pred_fallthru
      _
    // Predicated region
    $region6: #{tpu_custom_call.1} parent=1 // pred_check
      _
    $region7: #{tpu_custom_call.1} parent=1 // pred_check_branch
      %24 = sbr.rel (0) target = $region9
    $region8: #{tpu_custom_call.1} parent=1 // pred_region
      %26 = vsyncadd [#allocation7], 0
      %s27 = sshll.u32 %s1, 4
      %s28 = int_to_ptr.hbm [resolvable:$true] %s27
      %s29 = sshll.u32 [#allocation6], 4
      %s30 = int_to_ptr.vmem [resolvable:$true] %s29
      %35 = dma.hbm_to_vmem [thread:$0]  %s28, 512, %s30, [#allocation7], 128, 128, 8
    $region9: #{tpu_custom_call.1} parent=1 // pred_fallthru
      _
    // Predicated region
    $region10: #{tpu_custom_call.1} parent=1 // pred_check
      _
    $region11: #{tpu_custom_call.1} parent=1 // pred_check_branch
      %37 = sbr.rel (0) target = $region13
    $region12: #{tpu_custom_call.1} parent=1 // pred_region
      %39 = vsyncadd [#allocation7], 0
      %s40 = sshll.u32 %s2, 4
      %s41 = int_to_ptr.hbm [resolvable:$true] %s40
      %s42 = sshll.u32 [#allocation8], 4
      %s43 = int_to_ptr.vmem [resolvable:$true] %s42
      %48 = dma.hbm_to_vmem [thread:$0]  %s41, 512, %s43, [#allocation7], 128, 128, 8
    $region13: #{tpu_custom_call.1} parent=1 // pred_fallthru
      _
    // Predicated region
    $region14: #{tpu_custom_call.1} parent=1 // pred_check
      _
    $region15: #{tpu_custom_call.1} parent=1 // pred_check_branch
      %50 = sbr.rel (0) target = $region17
    $region16: #{tpu_custom_call.1} parent=1 // pred_region
      _
    $region17: #{tpu_custom_call.1} parent=1 // pred_fallthru
      _
    // Predicated region
    $region18: #{tpu_custom_call.1} parent=1 // pred_check
      _
    $region19: #{tpu_custom_call.1} parent=1 // pred_check_branch
      %52 = sbr.rel (0) target = $region21
    $region20: #{tpu_custom_call.1} parent=1 // pred_region
      %54 = dma.done [#allocation4], 128
    $region21: #{tpu_custom_call.1} parent=1 // pred_fallthru
      _
    // Predicated region
    $region22: #{tpu_custom_call.1} parent=1 // pred_check
      _
    $region23: #{tpu_custom_call.1} parent=1 // pred_check_branch
      %56 = sbr.rel (0) target = $region25
    $region24: #{tpu_custom_call.1} parent=1 // pred_region
      %58 = dma.done [#allocation7], 512
    $region25: #{tpu_custom_call.1} parent=1 // pred_fallthru
      _
    // Predicated region
    $region26: #{tpu_custom_call.1} parent=1 // pred_check
      _
    $region27: #{tpu_custom_call.1} parent=1 // pred_check_branch
      %60 = sbr.rel (0) target = $region29
    $region28: #{tpu_custom_call.1} parent=1 // pred_region
      %62 = dma.done [#allocation7], 512
    $region29: #{tpu_custom_call.1} parent=1 // pred_fallthru
      _
    %p63 = scmp.eq.s32.totalorder 0, 0
    // Predicated region
    $region30: #{tpu_custom_call.1} parent=1 // pred_check
      %p64 = pneg %p63
    $region31: #{tpu_custom_call.1} parent=1 // pred_check_branch
      %66 = sbr.rel (%p64) target = $region33
    $region32: #{tpu_custom_call.1} parent=1 // pred_region
      %vm67 = vcmask 261120
      %68 = vst.msk [vmem:[#allocation2] sm:$0xff] %vm67, 0.0
    $region33: #{tpu_custom_call.1} parent=1 // pred_fallthru
      _
    %v69 = vld [vmem:[#allocation3] sm:$0xff]
    %v70 = vld [vmem:[#allocation6] sm:$0xff]
    %v71 = vld [vmem:[#allocation6 + $0x8] sm:$0xff]
    %v72 = vld [vmem:[#allocation6 + $0x10] sm:$0xff]
    %v73 = vld [vmem:[#allocation6 + $0x18] sm:$0xff]
    %vm74 = vcmask 261120
    %v76 = vsel %vm74, %v69, 0
    %78 = vmatpush.msra.mxu0 0.0
    %79 = vmatpush.msra.mxu0 0.0
    %80 = vmatpush.msra.mxu0 0.0
    %81 = vmatpush.msra.mxu0 0.0
    %82 = vmatpush.msra.mxu0 0.0
    %83 = vmatpush.msra.mxu0 0.0
    %84 = vmatpush.msra.mxu0 0.0
    %85 = vmatpush.msra.mxu0 0.0
    %86 = vmatpush.msra.mxu0 0.0
    %87 = vmatpush.msra.mxu0 0.0
    %88 = vmatpush.msra.mxu0 0.0
    %89 = vmatpush.msra.mxu0 0.0
    %90 = vmatpush.msra.mxu0 %v73
    %91 = vmatpush.msra.mxu0 %v72
    %92 = vmatpush.msra.mxu0 %v71
    %93 = vmatpush.msra.mxu0 %v70
    %94 = vmatmul.f32.gmra.mxu0 %v76
    %v95 = vpop.f32.mrf.mxu0
    %v96 = vadd.f32 0.0, %v95
    %97 = vdwg.mxu0
    %v98 = vld [vmem:[#allocation2] sm:$0xff]
    %v99 = vld [vmem:[#allocation8] sm:$0xff]
    %v100 = vld [vmem:[#allocation8 + $0x8] sm:$0xff]
    %v101 = vld [vmem:[#allocation8 + $0x10] sm:$0xff]
    %v102 = vld [vmem:[#allocation8 + $0x18] sm:$0xff]
    %vm103 = vcmask 785408
    %v105 = vsel %vm103, %v96, 0
    %v108 = vsel %vm103, %v99, 0
    %v111 = vsel %vm103, %v100, 0
    %v114 = vsel %vm103, %v101, 0
    %v117 = vsel %vm103, %v102, 0
    %119 = vmatpush.xpose.msra.mxu0 0.0
    %120 = vmatpush.xpose.msra.mxu0 0.0
    %121 = vmatpush.xpose.msra.mxu0 0.0
    %122 = vmatpush.xpose.msra.mxu0 0.0
    %123 = vmatpush.xpose.msra.mxu0 0.0
    %124 = vmatpush.xpose.msra.mxu0 0.0
    %125 = vmatpush.xpose.msra.mxu0 0.0
    %126 = vmatpush.xpose.msra.mxu0 0.0
    %127 = vmatpush.xpose.msra.mxu0 0.0
    %128 = vmatpush.xpose.msra.mxu0 0.0
    %129 = vmatpush.xpose.msra.mxu0 0.0
    %130 = vmatpush.xpose.msra.mxu0 0.0
    %131 = vmatpush.xpose.msra.mxu0 %v117
    %132 = vmatpush.xpose.msra.mxu0 %v114
    %133 = vmatpush.xpose.msra.mxu0 %v111
    %134 = vmatpush.xpose.msra.mxu0 %v108
    %135 = vmatmul.f32.gmra.mxu0 %v105
    %v136 = vpop.f32.mrf.mxu0
    %v137 = vadd.f32 0.0, %v136
    %138 = vdwg.mxu0
    %v139 = vadd.f32 %v98, %v137
    %140 = vst.msk [vmem:[#allocation2] sm:$0xff] %vm74, %v139
    // Predicated region
    $region34: #{tpu_custom_call.1} parent=1 // pred_check
      %p141 = pneg %p63
    $region35: #{tpu_custom_call.1} parent=1 // pred_check_branch
      %143 = sbr.rel (%p141) target = $region37
    $region36: #{tpu_custom_call.1} parent=1 // pred_region
      %v144 = vld [vmem:[#allocation2] sm:$0xff]
      %v145 = vld [vmem:[%s3] sm:$0x1]
      %v147 = vperm.slane %v145, 0
      %v149 = vadd.f32 %v144, %v147
      %150 = vst.msk [vmem:[#allocation9] sm:$0xff] %vm74, %v149
    $region37: #{tpu_custom_call.1} parent=1 // pred_fallthru
      _
    // Predicated region
    $region38: #{tpu_custom_call.1} parent=1 // pred_check
      _
    $region39: #{tpu_custom_call.1} parent=1 // pred_check_branch
      %152 = sbr.rel (0) target = $region41
    $region40: #{tpu_custom_call.1} parent=1 // pred_region
      %154 = vsyncadd [#allocation5], 0
      %s156 = sshll.u32 [#allocation9], 4
      %s157 = int_to_ptr.vmem [resolvable:$true] %s156
      %s158 = sshll.u32 %s4, 4
      %s159 = int_to_ptr.hbm [resolvable:$true] %s158
      %161 = dma.vmem_to_hbm [thread:$0]  %s157, 128, %s159, [#allocation5]
    $region41: #{tpu_custom_call.1} parent=1 // pred_fallthru
      _
    // Predicated region
    $region42: #{tpu_custom_call.1} parent=1 // pred_check
      _
    $region43: #{tpu_custom_call.1} parent=1 // pred_check_branch
      %163 = sbr.rel (0) target = $region45
    $region44: #{tpu_custom_call.1} parent=1 // pred_region
      %165 = dma.done [#allocation5], 128
    $region45: #{tpu_custom_call.1} parent=1 // pred_fallthru
      _
    %166 = vsyncpa [#allocation4], 1
    %167 = vsyncpa [#allocation7], 1
    %168 = vsyncpa [#allocation5], 1

</llo_original>
